<compile_context>
chip_gen: v5e
topology: v5e:2x2
jax: 0.10.0
libtpu: 0.0.40
codegen_flags: <defaults>
</compile_context>

<pallas_src>
import functools

import jax
import jax.numpy as jnp
from jax.experimental import pallas as pl
from jax.experimental.pallas import tpu as pltpu

LANE = 128  # TPU lane width (last dim)


def _tpu_tuning():
    """Generation-aware sizes: fused-path cutoff, fused VMEM limit, block bytes."""
    kind = ""
    try:
        kind = jax.devices()[0].device_kind.lower()
    except Exception:  # pragma: no cover - defensive
        pass
    if "7" in kind:
        # v7x: 64 MiB VMEM / TC, ~3.2 TB/s HBM -> bigger blocks, lower fused cutoff.
        return dict(fused_cutoff=20 << 20, fused_vmem=56 << 20,
                    p1_block=4 << 20, p2_block=4 << 20)
    if "v5 lite" in kind or "v5e" in kind or "v5lite" in kind:
        # v5e: 128 MiB VMEM, but 16 MiB default scoped -> cap pass-2 blocks at 2 MiB
        # (2 arrays x 2 buffers x 2 MiB = 8 MiB); pass-1 streams one input, 4 MiB ok.
        return dict(fused_cutoff=40 << 20, fused_vmem=100 << 20,
                    p1_block=4 << 20, p2_block=2 << 20)
    if "v6" in kind or "v5" in kind or "v4" in kind:
        # v6e / v5p / v4: 128 MiB VMEM, 32 MiB default scoped limit.
        return dict(fused_cutoff=40 << 20, fused_vmem=100 << 20,
                    p1_block=4 << 20, p2_block=4 << 20)
    # Unknown backend: conservative.
    return dict(fused_cutoff=6 << 20, fused_vmem=None,
                p1_block=1 << 20, p2_block=1 << 20)


def _fused_kernel(x_ref, o_ref, *, keep):
    """Single-shot path: whole tensor resident in VMEM; min/max + mask fused."""
    x = x_ref[...]
    lo = jnp.min(x).astype(jnp.float32)
    hi = jnp.max(x).astype(jnp.float32)
    # thresh = lo + keep*(hi-lo);  x > thresh  <=>  (x-lo)/(hi-lo) > keep.
    # When hi == lo this gives thresh == lo so nothing is dropped, matching the
    # reference's 0/0 -> NaN -> "NaN > keep is False" behaviour.
    t = lo + jnp.float32(keep) * (hi - lo)
    if not jnp.issubdtype(x.dtype, jnp.floating):
        t = jnp.floor(t)  # integer compare: floor, never truncate toward zero
    t = t.astype(x.dtype)
    o_ref[...] = jnp.where(x > t, jnp.zeros_like(x), x)


def _partial_minmax_kernel(x_ref, pmin_ref, pmax_ref, *, rows_total, block_rows):
    """Pass 1: per-block (8, 128) partial min / max (VPU-only, fully parallel)."""
    i = pl.program_id(0)

    def reduce_store(xmin_src, xmax_src):
        r = xmin_src.shape[0]
        if r % 8 == 0 and r >= 8:
            # (r, 128) -> (r//8, 8, 128) matches the native vreg tiling; the axis-0
            # reduce is a chain of element-wise VPU min/max (cross-lane reduce is
            # deferred to the tiny XLA reduction in the wrapper).
            pmin_ref[0] = jnp.min(xmin_src.reshape(r // 8, 8, LANE), axis=0)
            pmax_ref[0] = jnp.max(xmax_src.reshape(r // 8, 8, LANE), axis=0)
        else:
            # Tiny single-block fallback (row count not a multiple of 8).
            pmin_ref[0] = jnp.broadcast_to(jnp.min(xmin_src), (8, LANE))
            pmax_ref[0] = jnp.broadcast_to(jnp.max(xmax_src), (8, LANE))

    if rows_total % block_rows != 0:
        # Only the last block has out-of-range rows; gate the (7-ops/vreg) masked
        # path with pl.when so every full block keeps the 2-ops/vreg memory-bound
        # path.  Matters most on v7x where the masked path approaches VALU-bound.
        last = pl.num_programs(0) - 1

        @pl.when(i != last)
        def _():
            x = x_ref[...]
            reduce_store(x, x)

        @pl.when(i == last)
        def _():
            x = x_ref[...]
            if jnp.issubdtype(x.dtype, jnp.floating):
                hi = jnp.asarray(jnp.inf, x.dtype)
                lo = jnp.asarray(-jnp.inf, x.dtype)
            else:
                info = jnp.iinfo(x.dtype)
                hi = jnp.asarray(info.max, x.dtype)
                lo = jnp.asarray(info.min, x.dtype)
            row = jax.lax.broadcasted_iota(jnp.int32, x.shape, 0) + i * block_rows
            valid = row < rows_total
            reduce_store(jnp.where(valid, x, hi), jnp.where(valid, x, lo))
    else:
        x = x_ref[...]
        reduce_store(x, x)


def _mask_kernel(thresh_ref, x_ref, o_ref):
    """Pass 2: single compare + select against the precomputed global threshold."""
    x = x_ref[...]
    t = thresh_ref[0, 0].astype(x.dtype)  # one scalar cast, not per element
    o_ref[...] = jnp.where(x > t, jnp.zeros_like(x), x)


def max_dropout(x, drop=0.3, training=True, *,
                fused_cutoff_bytes=None, block_bytes=None, donate_input=False):
    """Pallas implementation of MaxDropout.forward."""
    if drop < 0 or drop > 1:
        raise ValueError(
            "dropout probability has to be between 0 and 1, but got {}".format(drop))
    if not training:
        return x
    keep = float(1.0 - drop)

    tune = _tpu_tuning()
    if fused_cutoff_bytes is None:
        fused_cutoff_bytes = tune["fused_cutoff"]

    orig_shape = x.shape
    n = x.size
    if n == 0:
        return x
    itemsize = jnp.dtype(x.dtype).itemsize
    nbytes = n * itemsize
    lane_ok = (n % LANE == 0)

    # ------------- Fused single-kernel fast path (VMEM-resident tensor). -------
    if nbytes <= fused_cutoff_bytes:
        if lane_ok:
            x2 = x.reshape(n // LANE, LANE)   # lane-dense view: unmasked vst path
        elif x.ndim >= 2:
            x2 = x                            # ragged lanes: full-extent block, no copies
        else:
            x2 = x.reshape(1, n)
        cp = None
        if tune["fused_vmem"] is not None:
            vmem_limit = min(tune["fused_vmem"],
                             max(2 * nbytes + (4 << 20), 16 << 20))
            cp = pltpu.CompilerParams(vmem_limit_bytes=vmem_limit)
        out2 = pl.pallas_call(
            functools.partial(_fused_kernel, keep=keep),
            out_shape=jax.ShapeDtypeStruct(x2.shape, x2.dtype),
            in_specs=[pl.BlockSpec(memory_space=pltpu.MemorySpace.VMEM)],
            out_specs=pl.BlockSpec(memory_space=pltpu.MemorySpace.VMEM),
            input_output_aliases=({0: 0} if donate_input else {}),
            compiler_params=cp,
        )(x2)
        return out2.reshape(orig_shape)

    # ------------- Two-pass streaming path (tensor larger than VMEM). ----------
    flat = x.reshape(-1)
    lane_pad = (-n) % LANE
    if lane_pad:
        # TODO(synk): the rare huge-AND-ragged case still pays a pad + slice copy;
        # handle the lane tail in-kernel (masked store on the last block) if this
        # shape class ever matters.  Padding with an existing element keeps the
        # global min/max exact.
        flat = jnp.concatenate([flat, jnp.broadcast_to(flat[:1], (lane_pad,))])
    x2 = flat.reshape(-1, LANE)
    rows = x2.shape[0]

    # dtype-aware sublane multiple (f32: 8, bf16: 16, int8/fp8: 32).
    sub_mult = max(8, 32 // itemsize)

    def pick_block_rows(target_bytes):
        target = max(sub_mult,
                     (target_bytes // (LANE * itemsize)) // sub_mult * sub_mult)
        return rows if rows <= target else target

    p1_rows = pick_block_rows(block_bytes if block_bytes else tune["p1_block"])
    p2_rows = pick_block_rows(block_bytes if block_bytes else tune["p2_block"])

    # ---- Pass 1: per-block partial min / max (parallel across TensorCores). ----
    n1 = pl.cdiv(rows, p1_rows)
    part_min, part_max = pl.pallas_call(
        functools.partial(_partial_minmax_kernel,
                          rows_total=rows, block_rows=p1_rows),
        out_shape=(jax.ShapeDtypeStruct((n1, 8, LANE), x2.dtype),
                   jax.ShapeDtypeStruct((n1, 8, LANE), x2.dtype)),
        grid=(n1,),
        in_specs=[pl.BlockSpec((p1_rows, LANE), lambda i: (i, 0))],
        out_specs=(pl.BlockSpec((1, 8, LANE), lambda i: (i, 0, 0)),
                   pl.BlockSpec((1, 8, LANE), lambda i: (i, 0, 0))),
        compiler_params=pltpu.CompilerParams(dimension_semantics=("parallel",)),
    )(x2)

    # Tiny final reduction + threshold precompute (scalar work, done by XLA).
    xmin = jnp.min(part_min).astype(jnp.float32)
    xmax = jnp.max(part_max).astype(jnp.float32)
    thresh = xmin + jnp.float32(keep) * (xmax - xmin)
    if not jnp.issubdtype(x.dtype, jnp.floating):
        thresh = jnp.floor(thresh)  # so the in-kernel integer cast is exact
    thresh = thresh.reshape(1, 1)

    # ---- Pass 2: elementwise masked fill with the global threshold. ----
    n2 = pl.cdiv(rows, p2_rows)
    out2 = pl.pallas_call(
        _mask_kernel,
        out_shape=jax.ShapeDtypeStruct(x2.shape, x2.dtype),
        grid=(n2,),
        in_specs=[pl.BlockSpec(memory_space=pltpu.MemorySpace.SMEM),
                  pl.BlockSpec((p2_rows, LANE), lambda i: (i, 0))],
        out_specs=pl.BlockSpec((p2_rows, LANE), lambda i: (i, 0)),
        input_output_aliases=({1: 0} if donate_input else {}),
        compiler_params=pltpu.CompilerParams(dimension_semantics=("parallel",)),
    )(thresh, x2)

    if lane_pad:
        return out2.reshape(-1)[:n].reshape(orig_shape)
    return out2.reshape(orig_shape)


def _reference(x, drop=0.3):
    keep = 1.0 - drop
    norm = (x - x.min()) / (x.max() - x.min())
    return jnp.where(norm > keep, jnp.zeros_like(x), x)


if __name__ == "__main__":
    key = jax.random.PRNGKey(0)

    # Typical conv activation (NCHW), small: batch=2, channels=4, 16x16 spatial.
    # numel = 2048 -> fused single-kernel VMEM path.
    x = jax.random.normal(key, (2, 4, 16, 16), dtype=jnp.float32)
    out = jax.block_until_ready(max_dropout(x, drop=0.3, training=True))
    ref = _reference(x, drop=0.3)
    assert out.shape == x.shape and out.dtype == x.dtype
    assert jnp.allclose(out, ref, atol=1e-6), "mismatch vs reference (fused path)"

    # Eval mode is identity.
    assert jnp.array_equal(max_dropout(x, drop=0.3, training=False), x)

    # Force the two-pass streaming path with tiny blocks so the multi-block grid
    # and the pl.when-gated ragged-last-block masking are exercised.  The
    # reference uses the same threshold formulation as the kernel (the divide
    # form can differ by 1 ULP exactly at the decision boundary, which is
    # irrelevant for dropout).
    x2 = jax.random.normal(jax.random.PRNGKey(1), (2, 4, 36, 36), dtype=jnp.float32)
    out2 = jax.block_until_ready(
        max_dropout(x2, drop=0.3, training=True,
                    fused_cutoff_bytes=0, block_bytes=8192))
    keep32 = jnp.float32(1.0 - 0.3)
    lo32 = x2.min().astype(jnp.float32)
    hi32 = x2.max().astype(jnp.float32)
    thr32 = lo32 + keep32 * (hi32 - lo32)
    ref2 = jnp.where(x2 > thr32, jnp.zeros_like(x2), x2)
    assert jnp.allclose(out2, ref2, atol=1e-6), "mismatch vs reference (two-pass)"

    # Integer dtype: the threshold is floored before the integer compare
    # (plain truncation toward zero would mis-keep elements for negative
    # thresholds).  Reference below uses the kernel's intended (equivalent)
    # floored-threshold semantics.
    xi = jax.random.randint(jax.random.PRNGKey(2), (4, 64), -50, 50, dtype=jnp.int32)
    outi = jax.block_until_ready(max_dropout(xi, drop=0.3, training=True))
    loi = xi.min().astype(jnp.float32)
    hii = xi.max().astype(jnp.float32)
    thri = jnp.floor(loi + keep32 * (hii - loi)).astype(jnp.int32)
    refi = jnp.where(xi > thri, jnp.zeros_like(xi), xi)
    assert jnp.array_equal(outi, refi), "mismatch vs reference (int32)"

    print("KERNEL_OK")
</pallas_src>

<mosaic_0001>
module attributes {stable_mosaic.version = 11 : i64} {
  func.func @_fused_kernel(%arg0: memref<16x128xf32, #tpu.memory_space<vmem>>, %arg1: memref<16x128xf32, #tpu.memory_space<vmem>>) attributes {dimension_semantics = [], scalar_prefetch = 0 : i64, scratch_operands = 0 : i64, tpu.core_type = #tpu.core_type<tc>} {
    %c0 = arith.constant 0 : index
    %c0_0 = arith.constant 0 : index
    %0 = vector.load %arg0[%c0, %c0_0] : memref<16x128xf32, #tpu.memory_space<vmem>>, vector<16x128xf32>
    %1 = vector.shape_cast %0 : vector<16x128xf32> to vector<1x16x128xf32>
    %cst = arith.constant dense<0x7F800000> : vector<1xf32>
    %2 = vector.multi_reduction <minimumf>, %1, %cst [1, 2] : vector<1x16x128xf32> to vector<1xf32>
    %3 = vector.shape_cast %2 : vector<1xf32> to vector<1x1x1xf32>
    %4 = vector.extract %3[0, 0, 0] : f32 from vector<1x1x1xf32>
    %5 = vector.shape_cast %0 : vector<16x128xf32> to vector<1x16x128xf32>
    %cst_1 = arith.constant dense<0xFF800000> : vector<1xf32>
    %6 = vector.multi_reduction <maximumf>, %5, %cst_1 [1, 2] : vector<1x16x128xf32> to vector<1xf32>
    %7 = vector.shape_cast %6 : vector<1xf32> to vector<1x1x1xf32>
    %8 = vector.extract %7[0, 0, 0] : f32 from vector<1x1x1xf32>
    %9 = arith.subf %8, %4 : f32
    %cst_2 = arith.constant 0.699999988 : f32
    %10 = arith.mulf %cst_2, %9 : f32
    %11 = arith.addf %4, %10 : f32
    %12 = vector.broadcast %11 : f32 to vector<16x128xf32>
    %13 = arith.cmpf ogt, %0, %12 : vector<16x128xf32>
    %cst_3 = arith.constant 0.000000e+00 : f32
    %14 = vector.broadcast %cst_3 : f32 to vector<16x128xf32>
    %15 = arith.select %13, %14, %0 : vector<16x128xi1>, vector<16x128xf32>
    %c0_4 = arith.constant 0 : index
    %c0_5 = arith.constant 0 : index
    %16 = vector.load %arg1[%c0_4, %c0_5] : memref<16x128xf32, #tpu.memory_space<vmem>>, vector<16x128xf32>
    tpu.vector_store %arg1[%c0_4, %c0_5], %15 {strides = array<i32>} : memref<16x128xf32, #tpu.memory_space<vmem>>, vector<16x128xf32>,
    return
  }
}

</mosaic_0001>

<llo_original>
// kernel: tpu_custom_call.1
$region0: #{tpu_custom_call.1}
  #allocation0 [shape = 'u32[]', space=smem, size = 0x4, offset = 0x4, fixed_abs, tag = 'smem constant byte address 0x4 - core index']
  #allocation1 [shape = 'u32[72,128]{1,0:T(1,128)}', space=vmem, size = 0x9000, scoped, tag = 'internal scratch']
  %s0 = inlined_call_operand.hbm [shape: f32[16,128], index: 0, kind: input, shape index: {}]
  %s1 = inlined_call_operand.hbm [shape: f32[16,128], index: 1, kind: output, shape index: {}]
  %s2 = sld [smem:[#allocation0]]
  $region18: #{tpu_custom_call.1} parent=0
    _
  %s4 = ssub.s32 1, %s2
  %s5 = scalar_select 0, %s4, %s2
  $region1: #{tpu_custom_call.1} parent=0
    #allocation2 [shape = 'u8[8192]{0}', space=vmem, size = 0x2000, scoped, tag = 'input window, operand 0, single buffered']
    #allocation3 [shape = 's32[1]{0}', space=sflag, size = 0x4, scoped, tag = 'scoped memory for tpu_custom_call.1']
    #allocation4 [shape = 's32[1]{0}', space=sflag, size = 0x4, scoped, tag = 'scoped memory for tpu_custom_call.1']
    #allocation5 [shape = 'u8[8192]{0}', space=vmem, size = 0x2000, scoped, tag = 'output window, operand 0, single buffered']
    %6 = vsyncpa [#allocation3], 0
    %7 = vsyncpa [#allocation4], 0
    // Predicated region
    $region2: #{tpu_custom_call.1} parent=1 // pred_check
      _
    $region3: #{tpu_custom_call.1} parent=1 // pred_check_branch
      %9 = sbr.rel (0) target = $region5
    $region4: #{tpu_custom_call.1} parent=1 // pred_region
      %11 = vsyncadd [#allocation3], 0
      %s12 = sshll.u32 %s0, 4
      %s13 = int_to_ptr.hbm [resolvable:$true] %s12
      %s14 = sshll.u32 [#allocation2], 4
      %s15 = int_to_ptr.vmem [resolvable:$true] %s14
      %20 = dma.hbm_to_vmem [thread:$0]  %s13, 256, %s15, [#allocation3], 128, 128, 8
    $region5: #{tpu_custom_call.1} parent=1 // pred_fallthru
      _
    // Predicated region
    $region6: #{tpu_custom_call.1} parent=1 // pred_check
      _
    $region7: #{tpu_custom_call.1} parent=1 // pred_check_branch
      %22 = sbr.rel (0) target = $region9
    $region8: #{tpu_custom_call.1} parent=1 // pred_region
      %24 = dma.done [#allocation3], 256
    $region9: #{tpu_custom_call.1} parent=1 // pred_fallthru
      _
    %v25 = vld [vmem:[#allocation2] sm:$0xff]
    %v26 = vld [vmem:[#allocation2 + $0x8] sm:$0xff]
    %v27 = vmin.f32 %v25, %v26
    %28 = vmin.xlane.f32.xlu0 %v27
    %v29 = vpop.xlane.xlu0 %28
    %v30 = vrot.slane %v29, 4
    %v31 = vmin.f32 %v29, %v30
    %v32 = vrot.slane %v31, 2
    %v33 = vmin.f32 %v31, %v32
    %v34 = vrot.slane %v33, 1
    %v35 = vmin.f32 %v33, %v34
    %s36 = vtos %v35
    %v37 = vmax.f32 %v25, %v26
    %38 = vmax.xlane.f32.xlu0 %v37
    %v39 = vpop.xlane.xlu0 %38
    %v40 = vrot.slane %v39, 4
    %v41 = vmax.f32 %v39, %v40
    %v42 = vrot.slane %v41, 2
    %v43 = vmax.f32 %v41, %v42
    %v44 = vrot.slane %v43, 1
    %v45 = vmax.f32 %v43, %v44
    %s46 = vtos %v45
    %s47 = ssub.f32 %s46, %s36
    %s48 = smul.f32 %s47, 0.7
    %s49 = sadd.f32 %s36, %s48
    %v50 = vstv %s49
    %vm51 = vcmp.gt.f32.partialorder %v25, %v50
    %vm52 = vcmp.gt.f32.partialorder %v26, %v50
    %v53 = vsel %vm51, 0.0, %v25
    %v54 = vsel %vm52, 0.0, %v26
    %55 = vst [vmem:[#allocation5] sm:$0xff] %v53
    %56 = vst [vmem:[#allocation5 + $0x8] sm:$0xff] %v54
    // Predicated region
    $region10: #{tpu_custom_call.1} parent=1 // pred_check
      _
    $region11: #{tpu_custom_call.1} parent=1 // pred_check_branch
      %58 = sbr.rel (0) target = $region13
    $region12: #{tpu_custom_call.1} parent=1 // pred_region
      %60 = vsyncadd [#allocation4], 0
      %s61 = sshll.u32 [#allocation5], 4
      %s62 = int_to_ptr.vmem [resolvable:$true] %s61
      %s63 = sshll.u32 %s1, 4
      %s64 = int_to_ptr.hbm [resolvable:$true] %s63
      %69 = dma.vmem_to_hbm [thread:$0]  %s62, 256, %s64, [#allocation4], 128, 128, 8
    $region13: #{tpu_custom_call.1} parent=1 // pred_fallthru
      _
    // Predicated region
    $region14: #{tpu_custom_call.1} parent=1 // pred_check
      _
    $region15: #{tpu_custom_call.1} parent=1 // pred_check_branch
      %71 = sbr.rel (0) target = $region17
    $region16: #{tpu_custom_call.1} parent=1 // pred_region
      %73 = dma.done [#allocation4], 256
    $region17: #{tpu_custom_call.1} parent=1 // pred_fallthru
      _
    %74 = vsyncpa [#allocation3], 1
    %75 = vsyncpa [#allocation4], 1

</llo_original>
